<compile_context>
chip_gen: v7x
topology: tpu7x:2x2x1
jax: 0.10.0
libtpu: 0.0.40
codegen_flags: <defaults>
</compile_context>

<pallas_src>
import random

import numpy as np
import jax
import jax.numpy as jnp
from jax.experimental import pallas as pl
from jax.experimental.pallas import tpu as pltpu


def _round_up(x, m):
    return ((x + m - 1) // m) * m


def _mean_agg_kernel(mask_ref, embed_ref, inv_ref, out_ref, acc_ref):
    """acc += mask_tile @ embed_tile (f32 accum); scale rows by inv_neigh at end."""
    k = pl.program_id(2)

    @pl.when(k == 0)
    def _():
        acc_ref[...] = jnp.zeros_like(acc_ref)

    acc_ref[...] += jnp.dot(
        mask_ref[...], embed_ref[...], preferred_element_type=jnp.float32
    )

    @pl.when(k == pl.num_programs(2) - 1)
    def _():
        # Row scale applied once, in f32, on the accumulator ([tm,1] broadcast).
        out_ref[...] = (acc_ref[...] * inv_ref[...]).astype(out_ref.dtype)


def _mean_agg_pallas(mask_p, embed_p, inv_p, tm, tk, tn):
    """mask_p: [Np, Up] bf16, embed_p: [Up, Dp] bf16, inv_p: [Np, 1] f32
    -> [Np, Dp] f32 = diag(inv_p) @ mask_p @ embed_p (padded)."""
    Np, Up = mask_p.shape
    _, Dp = embed_p.shape
    grid = (Np // tm, Dp // tn, Up // tk)

    cost = pl.CostEstimate(
        flops=2 * Np * Up * Dp,
        transcendentals=0,
        bytes_accessed=(Np * Up * 2) + (Up * Dp * 2) + (Np * Dp * 4) + (Np * 4),
    )

    return pl.pallas_call(
        _mean_agg_kernel,
        out_shape=jax.ShapeDtypeStruct((Np, Dp), jnp.float32),
        grid_spec=pltpu.PrefetchScalarGridSpec(
            num_scalar_prefetch=0,
            grid=grid,
            in_specs=[
                pl.BlockSpec((tm, tk), lambda i, j, k: (i, k)),   # mask
                pl.BlockSpec((tk, tn), lambda i, j, k: (k, j)),   # embed
                pl.BlockSpec((tm, 1), lambda i, j, k: (i, 0)),    # 1/num_neigh
            ],
            out_specs=pl.BlockSpec((tm, tn), lambda i, j, k: (i, j)),
            scratch_shapes=[pltpu.VMEM((tm, tn), jnp.float32)],
        ),
        compiler_params=pltpu.CompilerParams(
            dimension_semantics=("parallel", "parallel", "arbitrary"),
        ),
        cost_estimate=cost,
    )(mask_p, embed_p, inv_p)


def _tile_and_pad_sizes(N, U, D):
    """Pick TPU-friendly tile sizes and padded dims (tiles evenly divide dims)."""
    Np8 = _round_up(max(N, 8), 8)
    Up128 = _round_up(max(U, 128), 128)
    Dp128 = _round_up(max(D, 128), 128)
    # Modest tiles: double-buffered bf16 inputs + f32 out/acc stay far below
    # the default scoped-VMEM limit on every chip, while keeping a >=512-wide
    # contraction per step when U allows it.
    tm = min(256, Np8)
    tk = min(512, Up128)
    tn = min(256, Dp128)
    Np = _round_up(Np8, tm)
    Up = _round_up(Up128, tk)
    Dp = _round_up(Dp128, tn)
    return (tm, tk, tn), (Np, Up, Dp)


class MeanAggregator:
    """JAX port of the PyTorch MeanAggregator.

    `features` is a callable: int array of node ids -> np.ndarray [k, D]
    (mirrors the PyTorch module, where features(...) returns numpy)."""

    def __init__(self, features, features_dim):
        self.features = features
        self.in_features = features_dim
        self.out_features = features_dim

    def forward(self, nodes, to_neighs, num_sample=20):
        # ----- host-side graph preprocessing (no Pallas equivalent) -----
        # TODO(synk): neighbor sampling / unique-node-set construction is
        # irregular Python-set logic; kept on host, only the dense matmul +
        # row scale runs in the Pallas kernel.
        samp_neighs = [
            set(random.sample(list(to_neigh), num_sample))
            if len(to_neigh) >= num_sample
            else set(to_neigh)
            for to_neigh in to_neighs
        ]
        unique_nodes_list = list(set.union(*samp_neighs))
        unique_nodes = {n: i for i, n in enumerate(unique_nodes_list)}

        N = len(samp_neighs)
        U = len(unique_nodes_list)

        embed_np = np.asarray(
            self.features(np.asarray(unique_nodes_list, dtype=np.int64)),
            dtype=np.float32,
        )
        if embed_np.ndim == 1:
            embed_np = embed_np[None, :]
        D = embed_np.shape[1]

        (tm, tk, tn), (Np, Up, Dp) = _tile_and_pad_sizes(N, U, D)

        # Build the *padded* arrays directly on host in their device dtypes
        # (bf16 mask is exact 0/1 -> lossless; half the HBM transfer bytes).
        rows = []
        cols = []
        inv_np = np.zeros((Np, 1), dtype=np.float32)
        for i, samp_neigh in enumerate(samp_neighs):
            for n in samp_neigh:
                rows.append(i)
                cols.append(unique_nodes[n])
            inv_np[i, 0] = 1.0 / max(len(samp_neigh), 1)
        mask_np = np.zeros((Np, Up), dtype=jnp.bfloat16)
        if rows:
            mask_np[np.asarray(rows, dtype=np.int64),
                    np.asarray(cols, dtype=np.int64)] = 1.0
        # padded rows keep inv_neigh = 0 -> padded output rows are exactly 0.

        embed_pad = np.zeros((Up, Dp), dtype=jnp.bfloat16)
        embed_pad[:U, :D] = embed_np

        mask_bf16 = jnp.asarray(mask_np)
        embed_bf16 = jnp.asarray(embed_pad)
        inv_f32 = jnp.asarray(inv_np)

        # ----- Pallas hot path: tiled bf16 matmul + f32 row scale -----
        out_p = _mean_agg_pallas(mask_bf16, embed_bf16, inv_f32, tm, tk, tn)
        return out_p[:N, :D]

    __call__ = forward


def _numpy_reference(nodes, to_neighs, num_sample, features_fn):
    """Pure-numpy replica of the PyTorch forward (uses the global `random`)."""
    samp_neighs = [
        set(random.sample(list(to_neigh), num_sample))
        if len(to_neigh) >= num_sample
        else set(to_neigh)
        for to_neigh in to_neighs
    ]
    unique_nodes_list = list(set.union(*samp_neighs))
    unique_nodes = {n: i for i, n in enumerate(unique_nodes_list)}
    mask = np.zeros((len(samp_neighs), len(unique_nodes)), dtype=np.float32)
    for i, samp_neigh in enumerate(samp_neighs):
        for n in samp_neigh:
            mask[i, unique_nodes[n]] = 1.0
    num_neigh = mask.sum(1, keepdims=True)
    num_neigh[num_neigh == 0] = 1.0
    mask = mask / num_neigh
    embed = np.asarray(
        features_fn(np.asarray(unique_nodes_list, dtype=np.int64)), dtype=np.float32
    )
    if embed.ndim == 1:
        embed = embed[None, :]
    return mask @ embed


if __name__ == "__main__":
    key = jax.random.PRNGKey(0)

    num_total_nodes = 64   # size of the embedding / feature table
    feat_dim = 32          # features_dim
    num_batch_nodes = 8    # nodes whose neighborhoods we aggregate
    num_sample = 5

    # Deterministic feature table (stands in for the `features` embedding fn).
    feat_table = np.asarray(
        jax.random.normal(key, (num_total_nodes, feat_dim), dtype=jnp.float32)
    )

    def features_fn(idx):
        return feat_table[np.asarray(idx)]

    # Deterministic synthetic neighbor lists.
    rng = random.Random(0)
    nodes = list(range(num_batch_nodes))
    to_neighs = [
        rng.sample(range(num_total_nodes), rng.randint(2, 12)) for _ in nodes
    ]

    # Reference (numpy) with the same sampling RNG stream as the kernel run.
    random.seed(0)
    ref = _numpy_reference(nodes, to_neighs, num_sample, features_fn)

    random.seed(0)
    agg = MeanAggregator(features_fn, feat_dim)
    out = agg(nodes, to_neighs, num_sample=num_sample)
    out = jax.block_until_ready(out)
    out_np = np.asarray(out)

    assert out_np.shape == (num_batch_nodes, feat_dim)
    assert np.all(np.isfinite(out_np))
    # bf16 embeddings + f32 accumulation: loose-but-meaningful tolerance.
    np.testing.assert_allclose(out_np, ref, rtol=2e-2, atol=2e-2)

    print("KERNEL_OK")
</pallas_src>

<mosaic_0001>
module attributes {stable_mosaic.version = 11 : i64} {
  func.func @_mean_agg_kernel(%arg0: i32, %arg1: i32, %arg2: i32, %arg3: memref<8x128xbf16, #tpu.memory_space<vmem>>, %arg4: memref<128x128xbf16, #tpu.memory_space<vmem>>, %arg5: memref<8x1xf32, #tpu.memory_space<vmem>>, %arg6: memref<8x128xf32, #tpu.memory_space<vmem>>, %arg7: memref<8x128xf32, #tpu.memory_space<vmem>>) attributes {dimension_semantics = [#tpu.dimension_semantics<parallel>, #tpu.dimension_semantics<parallel>, #tpu.dimension_semantics<arbitrary>], iteration_bounds = array<i64: 1, 1, 1>, scalar_prefetch = 0 : i64, scratch_operands = 1 : i64, tpu.core_type = #tpu.core_type<tc>, window_params = [{transform_indices = @transform_0, window_bounds = array<i64: 8, 128>}, {transform_indices = @transform_1, window_bounds = array<i64: 128, 128>}, {transform_indices = @transform_2, window_bounds = array<i64: 8, 1>}, {transform_indices = @transform_3, window_bounds = array<i64: 8, 128>}]} {
    %c0_i32 = arith.constant 0 : i32
    %0 = arith.cmpi eq, %arg2, %c0_i32 : i32
    %1 = arith.extui %0 : i1 to i32
    %c0_i32_0 = arith.constant 0 : i32
    %2 = arith.cmpi ne, %1, %c0_i32_0 : i32
    scf.if %2 {
      %cst_10 = arith.constant 0.000000e+00 : f32
      %12 = vector.broadcast %cst_10 : f32 to vector<8x128xf32>
      %c0_11 = arith.constant 0 : index
      %c0_12 = arith.constant 0 : index
      %13 = vector.load %arg7[%c0_11, %c0_12] : memref<8x128xf32, #tpu.memory_space<vmem>>, vector<8x128xf32>
      tpu.vector_store %arg7[%c0_11, %c0_12], %12 {strides = array<i32>} : memref<8x128xf32, #tpu.memory_space<vmem>>, vector<8x128xf32>,
    } else {
    }
    %c0 = arith.constant 0 : index
    %c0_1 = arith.constant 0 : index
    %3 = vector.load %arg7[%c0, %c0_1] : memref<8x128xf32, #tpu.memory_space<vmem>>, vector<8x128xf32>
    %c0_2 = arith.constant 0 : index
    %c0_3 = arith.constant 0 : index
    %4 = vector.load %arg3[%c0_2, %c0_3] : memref<8x128xbf16, #tpu.memory_space<vmem>>, vector<8x128xbf16>
    %c0_4 = arith.constant 0 : index
    %c0_5 = arith.constant 0 : index
    %5 = vector.load %arg4[%c0_4, %c0_5] : memref<128x128xbf16, #tpu.memory_space<vmem>>, vector<128x128xbf16>
    %cst = arith.constant dense<0.000000e+00> : vector<8x128xf32>
    %6 = tpu.matmul %4, %5, %cst {dimension_numbers = #tpu.dot_dimension_numbers<[1], [0], [0], [1], [0, 0, 1, 1], [], []>} : vector<8x128xbf16>, vector<128x128xbf16>, vector<8x128xf32> -> vector<8x128xf32>
    %7 = arith.addf %3, %6 : vector<8x128xf32>
    %c0_6 = arith.constant 0 : index
    %c0_7 = arith.constant 0 : index
    %8 = vector.load %arg7[%c0_6, %c0_7] : memref<8x128xf32, #tpu.memory_space<vmem>>, vector<8x128xf32>
    tpu.vector_store %arg7[%c0_6, %c0_7], %7 {strides = array<i32>} : memref<8x128xf32, #tpu.memory_space<vmem>>, vector<8x128xf32>,
    %c0_i32_8 = arith.constant 0 : i32
    %9 = arith.cmpi eq, %arg2, %c0_i32_8 : i32
    %10 = arith.extui %9 : i1 to i32
    %c0_i32_9 = arith.constant 0 : i32
    %11 = arith.cmpi ne, %10, %c0_i32_9 : i32
    scf.if %11 {
      %c0_10 = arith.constant 0 : index
      %c0_11 = arith.constant 0 : index
      %12 = vector.load %arg7[%c0_10, %c0_11] : memref<8x128xf32, #tpu.memory_space<vmem>>, vector<8x128xf32>
      %c0_12 = arith.constant 0 : index
      %c0_13 = arith.constant 0 : index
      %13 = vector.load %arg5[%c0_12, %c0_13] : memref<8x1xf32, #tpu.memory_space<vmem>>, vector<8x1xf32>
      %14 = vector.broadcast %13 : vector<8x1xf32> to vector<8x128xf32>
      %15 = arith.mulf %12, %14 : vector<8x128xf32>
      %c0_14 = arith.constant 0 : index
      %c0_15 = arith.constant 0 : index
      %16 = vector.load %arg6[%c0_14, %c0_15] : memref<8x128xf32, #tpu.memory_space<vmem>>, vector<8x128xf32>
      tpu.vector_store %arg6[%c0_14, %c0_15], %15 {strides = array<i32>} : memref<8x128xf32, #tpu.memory_space<vmem>>, vector<8x128xf32>,
    } else {
    }
    return
  }
  func.func @transform_0(%arg0: i32, %arg1: i32, %arg2: i32) -> (i32, i32) {
    %c0_i32 = arith.constant 0 : i32
    return %arg0, %arg2 : i32, i32
  }
  func.func @transform_1(%arg0: i32, %arg1: i32, %arg2: i32) -> (i32, i32) {
    %c0_i32 = arith.constant 0 : i32
    return %arg2, %arg1 : i32, i32
  }
  func.func @transform_2(%arg0: i32, %arg1: i32, %arg2: i32) -> (i32, i32) {
    %c0_i32 = arith.constant 0 : i32
    %c0_i32_0 = arith.constant 0 : i32
    return %arg0, %c0_i32 : i32, i32
  }
  func.func @transform_3(%arg0: i32, %arg1: i32, %arg2: i32) -> (i32, i32) {
    %c0_i32 = arith.constant 0 : i32
    return %arg0, %arg1 : i32, i32
  }
}

</mosaic_0001>

<llo_original>
// kernel: tpu_custom_call.1
$region0: #{tpu_custom_call.1}
  #allocation0 [shape = 'u32[]', space=smem, size = 0x4, offset = 0x4, fixed_abs, tag = 'smem constant byte address 0x4 - core index']
  #allocation1 [shape = 'u32[144,128]{1,0:T(1,128)}', space=vmem, size = 0x12000, scoped, tag = 'internal scratch']
  #allocation2 [shape = 'f32[8,128]{1,0:T(8,128)}', space=vmem, size = 0x1000, scoped, tag = 'scratch operand']
  %s0 = inlined_call_operand.vmem [shape: bf16[8,128], index: 0, kind: input, shape index: {}]
  %s1 = inlined_call_operand.hbm [shape: bf16[128,128], index: 1, kind: input, shape index: {}]
  %s2 = inlined_call_operand.vmem [shape: f32[8,1], index: 2, kind: input, shape index: {}]
  %s3 = inlined_call_operand.hbm [shape: f32[8,128], index: 3, kind: output, shape index: {}]
  %s4 = sld [smem:[#allocation0]]
  $region34: #{tpu_custom_call.1} parent=0
    _
  %s6 = ssub.s32 1, %s4
  %s7 = scalar_select 0, %s6, %s4
  $region1: #{tpu_custom_call.1} parent=0
    #allocation3 [shape = 'u8[32768]{0}', space=vmem, size = 0x8000, scoped, tag = 'input window, operand 1, single buffered']
    #allocation4 [shape = 's32[1]{0}', space=sflag, size = 0x4, scoped, tag = 'scoped memory for tpu_custom_call.1']
    #allocation5 [shape = 's32[1]{0}', space=sflag, size = 0x4, scoped, tag = 'scoped memory for tpu_custom_call.1']
    #allocation6 [shape = 'u8[4096]{0}', space=vmem, size = 0x1000, scoped, tag = 'output window, operand 0, single buffered']
    %8 = vsyncpa [#allocation4], 0
    %9 = vsyncpa [#allocation5], 0
    // Predicated region
    $region2: #{tpu_custom_call.1} parent=1 // pred_check
      _
    $region3: #{tpu_custom_call.1} parent=1 // pred_check_branch
      %11 = sbr.rel (0) target = $region5
    $region4: #{tpu_custom_call.1} parent=1 // pred_region
      _
    $region5: #{tpu_custom_call.1} parent=1 // pred_fallthru
      _
    // Predicated region
    $region6: #{tpu_custom_call.1} parent=1 // pred_check
      _
    $region7: #{tpu_custom_call.1} parent=1 // pred_check_branch
      %13 = sbr.rel (0) target = $region9
    $region8: #{tpu_custom_call.1} parent=1 // pred_region
      %s15 = ssub.s32 1024, 1024
      %16 = vsyncadd [#allocation4], %s15
      %s17 = sshll.u32 [#allocation3], 4
      %s18 = int_to_ptr.vmem [resolvable:$true] %s17
      %23 = dma.hbm_to_vmem [thread:$0]  %s1, 1024, %s18, [#allocation4], 64, 64, 4
    $region9: #{tpu_custom_call.1} parent=1 // pred_fallthru
      _
    // Predicated region
    $region10: #{tpu_custom_call.1} parent=1 // pred_check
      _
    $region11: #{tpu_custom_call.1} parent=1 // pred_check_branch
      %25 = sbr.rel (0) target = $region13
    $region12: #{tpu_custom_call.1} parent=1 // pred_region
      _
    $region13: #{tpu_custom_call.1} parent=1 // pred_fallthru
      _
    // Predicated region
    $region14: #{tpu_custom_call.1} parent=1 // pred_check
      _
    $region15: #{tpu_custom_call.1} parent=1 // pred_check_branch
      %27 = sbr.rel (0) target = $region17
    $region16: #{tpu_custom_call.1} parent=1 // pred_region
      %28 = dma.done [#allocation4], 1024
    $region17: #{tpu_custom_call.1} parent=1 // pred_fallthru
      _
    %p30 = scmp.eq.s32.totalorder 0, 0
    // Predicated region
    $region18: #{tpu_custom_call.1} parent=1 // pred_check
      %p31 = pneg %p30
    $region19: #{tpu_custom_call.1} parent=1 // pred_check_branch
      %33 = sbr.rel (%p31) target = $region21
    $region20: #{tpu_custom_call.1} parent=1 // pred_region
      %34 = vst [vmem:[#allocation2] sm:$0xff] 0.0
    $region21: #{tpu_custom_call.1} parent=1 // pred_fallthru
      _
    %v35 = vld [vmem:[#allocation2] sm:$0xff]
    %v36 = vld [vmem:[%s0] sm:$0xf]
    %v37 = vld [vmem:[#allocation3] sm:$0xf]
    %v38 = vld [vmem:[#allocation3 + $0x4] sm:$0xf]
    %v39 = vld [vmem:[#allocation3 + $0x8] sm:$0xf]
    %v40 = vld [vmem:[#allocation3 + $0xc] sm:$0xf]
    %v41 = vld [vmem:[#allocation3 + $0x10] sm:$0xf]
    %v42 = vld [vmem:[#allocation3 + $0x14] sm:$0xf]
    %v43 = vld [vmem:[#allocation3 + $0x18] sm:$0xf]
    %v44 = vld [vmem:[#allocation3 + $0x1c] sm:$0xf]
    %v45 = vld [vmem:[#allocation3 + $0x20] sm:$0xf]
    %v46 = vld [vmem:[#allocation3 + $0x24] sm:$0xf]
    %v47 = vld [vmem:[#allocation3 + $0x28] sm:$0xf]
    %v48 = vld [vmem:[#allocation3 + $0x2c] sm:$0xf]
    %v49 = vld [vmem:[#allocation3 + $0x30] sm:$0xf]
    %v50 = vld [vmem:[#allocation3 + $0x34] sm:$0xf]
    %v51 = vld [vmem:[#allocation3 + $0x38] sm:$0xf]
    %v52 = vld [vmem:[#allocation3 + $0x3c] sm:$0xf]
    %v69 = vunpack.c.l.b16 %v37
    %v70 = vunpack.c.l.b16 %v38
    %v71 = vunpack.c.l.b16 %v39
    %v72 = vunpack.c.l.b16 %v40
    %v73 = vunpack.c.l.b16 %v41
    %v74 = vunpack.c.l.b16 %v42
    %v75 = vunpack.c.l.b16 %v43
    %v76 = vunpack.c.l.b16 %v44
    %v77 = vunpack.c.l.b16 %v45
    %v78 = vunpack.c.l.b16 %v46
    %v79 = vunpack.c.l.b16 %v47
    %v80 = vunpack.c.l.b16 %v48
    %v81 = vunpack.c.l.b16 %v49
    %v82 = vunpack.c.l.b16 %v50
    %v83 = vunpack.c.l.b16 %v51
    %v84 = vunpack.c.l.b16 %v52
    %v85 = vpack.c.b16 %v70, %v69
    %v86 = vpack.c.b16 %v72, %v71
    %v87 = vpack.c.b16 %v74, %v73
    %v88 = vpack.c.b16 %v76, %v75
    %v89 = vpack.c.b16 %v78, %v77
    %v90 = vpack.c.b16 %v80, %v79
    %v91 = vpack.c.b16 %v82, %v81
    %v92 = vpack.c.b16 %v84, %v83
    %101 = vmatprep.subr.bf16.mxu0 0
    %102 = vmatpush1.bf16.msra.mxu0 %v85
    %103 = vmatprep.subr.bf16.mxu0 0
    %104 = vmatpush1.bf16.msra.mxu0 %v86
    %105 = vmatprep.subr.bf16.mxu0 0
    %106 = vmatpush1.bf16.msra.mxu0 %v87
    %107 = vmatprep.subr.bf16.mxu0 0
    %108 = vmatpush1.bf16.msra.mxu0 %v88
    %109 = vmatprep.subr.bf16.mxu0 0
    %110 = vmatpush1.bf16.msra.mxu0 %v89
    %111 = vmatprep.subr.bf16.mxu0 0
    %112 = vmatpush1.bf16.msra.mxu0 %v90
    %113 = vmatprep.subr.bf16.mxu0 0
    %114 = vmatpush1.bf16.msra.mxu0 %v91
    %115 = vmatprep.subr.bf16.mxu0 0
    %116 = vmatpush1.bf16.msra.mxu0 %v92
    %117 = vmatprep.subr.bf16.mxu0 0
    %118 = vmatpush1.bf16.msra.mxu0 0
    %119 = vmatprep.subr.bf16.mxu0 0
    %120 = vmatpush1.bf16.msra.mxu0 0
    %121 = vmatprep.subr.bf16.mxu0 0
    %122 = vmatpush1.bf16.msra.mxu0 0
    %123 = vmatprep.subr.bf16.mxu0 0
    %124 = vmatpush1.bf16.msra.mxu0 0
    %125 = vmatprep.subr.bf16.mxu0 0
    %126 = vmatpush1.bf16.msra.mxu0 0
    %127 = vmatprep.subr.bf16.mxu0 0
    %128 = vmatpush1.bf16.msra.mxu0 0
    %129 = vmatprep.subr.bf16.mxu0 0
    %130 = vmatpush1.bf16.msra.mxu0 0
    %131 = vmatprep.subr.bf16.mxu0 0
    %132 = vmatpush1.bf16.msra.mxu0 0
    %133 = vmatprep.mubr.bf16.mxu0 0
    %134 = vmatmul.mubr.bf16.gmra.mrb[0].mxu0 %v36
    %v135 = vpop.f32.mrb[0].mxu0
    %v136 = vadd.f32 0.0, %v135
    %v137 = vpop.f32.mrb[0].mxu0
    %v138 = vpop.f32.mrb[0].mxu0
    %v139 = vpop.f32.mrb[0].mxu0
    %140 = vdwg.mxu0
    %v141 = vadd.f32 %v35, %v136
    %142 = vst [vmem:[#allocation2] sm:$0xff] %v141
    // Predicated region
    $region22: #{tpu_custom_call.1} parent=1 // pred_check
      %p143 = pneg %p30
    $region23: #{tpu_custom_call.1} parent=1 // pred_check_branch
      %145 = sbr.rel (%p143) target = $region25
    $region24: #{tpu_custom_call.1} parent=1 // pred_region
      %v146 = vld [vmem:[#allocation2] sm:$0xff]
      %v147 = vld [vmem:[%s2] sm:$0xff]
      %149 = vset.pattern.permute.xlu0 0
      %150 = vperm.xlu0 %149, %v147
      %v151 = vpop.permute.xlu0 %150
      %v153 = vmul.f32 %v146, %v151
      %154 = vst [vmem:[#allocation6] sm:$0xff] %v153
    $region25: #{tpu_custom_call.1} parent=1 // pred_fallthru
      _
    // Predicated region
    $region26: #{tpu_custom_call.1} parent=1 // pred_check
      _
    $region27: #{tpu_custom_call.1} parent=1 // pred_check_branch
      %156 = sbr.rel (0) target = $region29
    $region28: #{tpu_custom_call.1} parent=1 // pred_region
      %s158 = ssub.s32 128, 128
      %159 = vsyncadd [#allocation5], %s158
      %s161 = sshll.u32 [#allocation6], 4
      %s162 = int_to_ptr.vmem [resolvable:$true] %s161
      %164 = dma.vmem_to_hbm [thread:$0]  %s162, 128, %s3, [#allocation5]
    $region29: #{tpu_custom_call.1} parent=1 // pred_fallthru
      _
    // Predicated region
    $region30: #{tpu_custom_call.1} parent=1 // pred_check
      _
    $region31: #{tpu_custom_call.1} parent=1 // pred_check_branch
      %166 = sbr.rel (0) target = $region33
    $region32: #{tpu_custom_call.1} parent=1 // pred_region
      %167 = dma.done [#allocation5], 128
    $region33: #{tpu_custom_call.1} parent=1 // pred_fallthru
      _
    %168 = vsyncpa [#allocation4], 1
    %169 = vsyncpa [#allocation5], 1

</llo_original>
